<compile_context>
chip_gen: v5e
topology: v5e:2x2
jax: 0.10.0
libtpu: 0.0.40
codegen_flags: <defaults>
</compile_context>

<pallas_src>
import functools

import jax
import jax.numpy as jnp
from jax import lax
from jax.experimental import pallas as pl
from jax.experimental.pallas import tpu as pltpu


def _concept_kernel_mxu(conc_ref, rep_ref, emb_ref, out_ref, *, num_c, num_skill):
    """MXU-expansion path.  One grid step = TL rows.

    conc_ref : (TL, C)             int32   concept ids (padding id == num_skill)
    rep_ref  : (num_skill, width)  bf16    block-of-ones expansion matrix (resident)
    emb_ref  : (1, width)          f32     flattened skill embedding table (resident)
    out_ref  : (TL, width)                 lane-dense output slab
    """
    conc = conc_ref[...]                                             # (TL, C), one load
    skill_ids = lax.broadcasted_iota(jnp.int32, (1, num_skill), 1)   # (1, S)

    # Narrow multi-hot counts (TL, num_skill): C compares at num_skill lanes only.
    # Padding id (== num_skill) never matches [0, num_skill-1]  ->  torch eye[..., :-1].
    counts = (conc[:, 0:1] == skill_ids).astype(jnp.int32)
    for c in range(1, num_c):
        counts = counts + (conc[:, c : c + 1] == skill_ids).astype(jnp.int32)

    # Expand counts to full width on the (otherwise idle) MXU.  counts are exact small
    # integers and rep is 0/1, so bf16 inputs with f32 accumulation are exact.
    expanded = jnp.dot(counts.astype(jnp.bfloat16), rep_ref[...],
                       preferred_element_type=jnp.float32)           # (TL, width)

    # Single full-width VPU multiply against the resident embedding row.
    out_ref[...] = (expanded * emb_ref[...]).astype(out_ref.dtype)


def _concept_kernel_wide(conc_ref, emb_ref, lane_skill_ref, out_ref, *, num_c):
    """Fallback for very large skill vocabularies (expansion matrix would not fit VMEM).

    conc_ref       : (TL, C)     int32
    emb_ref        : (1, width)  f32    flattened embedding table (resident)
    lane_skill_ref : (1, width)  int32  host-precomputed lane -> skill-id map (resident)
    out_ref        : (TL, width)
    """
    conc = conc_ref[...]
    lane_skill = lane_skill_ref[...]
    counts = (conc[:, 0:1] == lane_skill).astype(jnp.int32)
    for c in range(1, num_c):
        counts = counts + (conc[:, c : c + 1] == lane_skill).astype(jnp.int32)
    out_ref[...] = (counts.astype(jnp.float32) * emb_ref[...]).astype(out_ref.dtype)


def concept_integration(concepts, emb_table, *, out_dtype=jnp.float32,
                        force_wide=False, target_out_buffer_bytes=4 << 20):
    """concepts: (B, L, C) int; emb_table: (num_skill, emb_dim) f32.

    Returns (B, L, num_skill, emb_dim) in out_dtype.  out_dtype=jnp.bfloat16 halves HBM
    traffic (~2x on this store-bound kernel) if the downstream consumer tolerates it.
    """
    B, L, C = concepts.shape
    num_skill, emb_dim = emb_table.shape
    width = num_skill * emb_dim
    N = B * L

    conc_flat = concepts.astype(jnp.int32).reshape(N, C)
    emb_flat = emb_table.astype(jnp.float32).reshape(1, width)

    out_itemsize = jnp.dtype(out_dtype).itemsize
    out_row = width * out_itemsize

    # Generation-aware VMEM ceiling: ~75% of physical per-TC VMEM (v7x: 64 -> 48 MiB,
    # v5e/v6e: 128 -> 96 MiB), leaving headroom for compiler temporaries.
    try:
        vmem_cap = int(pltpu.get_tpu_info().vmem_capacity_bytes)
    except Exception:  # conservative fallback if the query is unavailable
        vmem_cap = 64 << 20
    vmem_limit = vmem_cap * 3 // 4

    # Use the MXU expansion only when the resident bf16 matrix comfortably fits VMEM.
    rep_bytes = num_skill * width * 2
    use_mxu = (not force_wide) and (2 * rep_bytes <= vmem_limit // 4)

    if use_mxu:
        # Resident constants (assume double-buffered by the pipeline).
        fixed_bytes = 2 * rep_bytes + 2 * width * 4
        # Per-row: 2 pipelined output buffers + 1 full-width f32 matmul temp
        #          + 2 concepts buffers + narrow int32/bf16 counts.
        per_row = 2 * out_row + width * 4 + 2 * C * 4 + 6 * num_skill
    else:
        fixed_bytes = 2 * (width * 4 + width * 4)        # emb row + lane->skill map
        # Per-row: 2 output buffers + int32 & f32 full-width count temps + concepts.
        per_row = 2 * out_row + 2 * width * 4 + 2 * C * 4

    avail = max(int(vmem_limit * 0.8) - fixed_bytes, 8 * per_row)
    tl_cap = max(8, avail // per_row)
    tl_target = max(8, target_out_buffer_bytes // out_row)
    TL = int(min(tl_cap, tl_target))
    # Sublane rule: second-to-last block dim must be a multiple of 8 or the full extent.
    TL = N if TL >= N else max(8, (TL // 8) * 8)

    grid = (pl.cdiv(N, TL),)   # ragged last block: OOB rows are masked on writeback

    if use_mxu:
        # Block-of-ones expansion matrix: rep[s, j] = 1 iff j // emb_dim == s.
        rep_mat = jnp.repeat(jnp.eye(num_skill, dtype=jnp.bfloat16), emb_dim, axis=1)
        kernel = functools.partial(_concept_kernel_mxu, num_c=C, num_skill=num_skill)
        in_specs = [
            pl.BlockSpec((TL, C), lambda i: (i, 0)),                 # concepts tile
            pl.BlockSpec((num_skill, width), lambda i: (0, 0)),      # expansion, resident
            pl.BlockSpec((1, width), lambda i: (0, 0)),              # emb row, resident
        ]
        operands = (conc_flat, rep_mat, emb_flat)
        flops = 2 * N * num_skill * width + N * width
    else:
        lane_skill = (jnp.arange(width, dtype=jnp.int32) // emb_dim).reshape(1, width)
        kernel = functools.partial(_concept_kernel_wide, num_c=C)
        in_specs = [
            pl.BlockSpec((TL, C), lambda i: (i, 0)),                 # concepts tile
            pl.BlockSpec((1, width), lambda i: (0, 0)),              # emb row, resident
            pl.BlockSpec((1, width), lambda i: (0, 0)),              # lane->skill, resident
        ]
        operands = (conc_flat, emb_flat, lane_skill)
        flops = N * width * (2 * C + 1)

    cost = pl.CostEstimate(
        flops=int(flops),
        transcendentals=0,
        bytes_accessed=int(N * out_row + N * C * 4 + fixed_bytes // 2),
    )

    out_flat = pl.pallas_call(
        kernel,
        out_shape=jax.ShapeDtypeStruct((N, width), out_dtype),
        grid_spec=pltpu.PrefetchScalarGridSpec(
            num_scalar_prefetch=0,
            grid=grid,
            in_specs=in_specs,
            out_specs=pl.BlockSpec((TL, width), lambda i: (i, 0)),
        ),
        compiler_params=pltpu.CompilerParams(
            dimension_semantics=("parallel",),   # lets v7x shard tiles across both TCs
            vmem_limit_bytes=int(vmem_limit),
        ),
        cost_estimate=cost,
    )(*operands)

    # Row-major reshape back to the PyTorch axis order (free).
    return out_flat.reshape(B, L, num_skill, emb_dim)


def concept_integration_ref(concepts, emb_table, num_skill):
    # Pure-JAX mirror of the PyTorch forward.
    eye = jnp.eye(num_skill + 1, dtype=jnp.float32)
    shape_concept = eye[concepts][..., :-1]               # (B, L, C, num_skill)
    concept_vector1 = shape_concept.sum(-2)[..., None]    # (B, L, num_skill, 1)
    concept_vector2 = emb_table[None, None]                # (1, 1, num_skill, emb_dim)
    return concept_vector1 * concept_vector2


if __name__ == "__main__":
    num_skill, emb_dim = 16, 32
    B, L, C = 2, 8, 4

    key = jax.random.PRNGKey(0)
    k_conc, k_emb = jax.random.split(key)

    # Concept ids in [0, num_skill]; id == num_skill is padding and contributes nothing.
    concepts = jax.random.randint(k_conc, (B, L, C), 0, num_skill + 1, dtype=jnp.int32)
    # Synthetic Embedding weight table; only rows arange(num_skill) are used by the module.
    emb_table = jax.random.normal(k_emb, (num_skill, emb_dim), dtype=jnp.float32)

    expected = concept_integration_ref(concepts, emb_table, num_skill)

    out = concept_integration(concepts, emb_table)          # MXU-expansion path
    jax.block_until_ready(out)
    assert out.shape == (B, L, num_skill, emb_dim)
    assert jnp.allclose(out, expected, atol=1e-6), "MXU-path output mismatch vs reference"

    out_wide = concept_integration(concepts, emb_table, force_wide=True)  # fallback path
    jax.block_until_ready(out_wide)
    assert jnp.allclose(out_wide, expected, atol=1e-6), "wide-path output mismatch vs reference"

    print("KERNEL_OK")
</pallas_src>

<mosaic_0001>
module attributes {stable_mosaic.version = 11 : i64} {
  func.func @_concept_kernel_mxu(%arg0: i32, %arg1: memref<16x4xi32, #tpu.memory_space<vmem>>, %arg2: memref<16x512xbf16, #tpu.memory_space<vmem>>, %arg3: memref<1x512xf32, #tpu.memory_space<vmem>>, %arg4: memref<16x512xf32, #tpu.memory_space<vmem>>) attributes {dimension_semantics = [#tpu.dimension_semantics<parallel>], iteration_bounds = array<i64: 1>, scalar_prefetch = 0 : i64, scratch_operands = 0 : i64, tpu.core_type = #tpu.core_type<tc>, window_params = [{transform_indices = @transform_0, window_bounds = array<i64: 16, 4>}, {pipeline_mode = #tpu.pipeline_mode<synchronous>, transform_indices = @transform_1, window_bounds = array<i64: 16, 512>}, {pipeline_mode = #tpu.pipeline_mode<synchronous>, transform_indices = @transform_2, window_bounds = array<i64: 1, 512>}, {transform_indices = @transform_3, window_bounds = array<i64: 16, 512>}]} {
    %c0 = arith.constant 0 : index
    %c0_0 = arith.constant 0 : index
    %0 = vector.load %arg1[%c0, %c0_0] : memref<16x4xi32, #tpu.memory_space<vmem>>, vector<16x4xi32>
    %1 = tpu.iota {dimensions = array<i32: 1>} : vector<1x16xi32>
    %2 = vector.extract_strided_slice %0 {offsets = [0, 0], sizes = [16, 1], strides = [1, 1]} : vector<16x4xi32> to vector<16x1xi32>
    %3 = vector.broadcast %2 : vector<16x1xi32> to vector<16x16xi32>
    %4 = vector.broadcast %1 : vector<1x16xi32> to vector<16x16xi32>
    %5 = arith.cmpi eq, %3, %4 : vector<16x16xi32>
    %6 = arith.extui %5 : vector<16x16xi1> to vector<16x16xi32>
    %7 = vector.extract_strided_slice %0 {offsets = [0, 1], sizes = [16, 1], strides = [1, 1]} : vector<16x4xi32> to vector<16x1xi32>
    %8 = vector.broadcast %7 : vector<16x1xi32> to vector<16x16xi32>
    %9 = vector.broadcast %1 : vector<1x16xi32> to vector<16x16xi32>
    %10 = arith.cmpi eq, %8, %9 : vector<16x16xi32>
    %11 = arith.extui %10 : vector<16x16xi1> to vector<16x16xi32>
    %12 = arith.addi %6, %11 : vector<16x16xi32>
    %13 = vector.extract_strided_slice %0 {offsets = [0, 2], sizes = [16, 1], strides = [1, 1]} : vector<16x4xi32> to vector<16x1xi32>
    %14 = vector.broadcast %13 : vector<16x1xi32> to vector<16x16xi32>
    %15 = vector.broadcast %1 : vector<1x16xi32> to vector<16x16xi32>
    %16 = arith.cmpi eq, %14, %15 : vector<16x16xi32>
    %17 = arith.extui %16 : vector<16x16xi1> to vector<16x16xi32>
    %18 = arith.addi %12, %17 : vector<16x16xi32>
    %19 = vector.extract_strided_slice %0 {offsets = [0, 3], sizes = [16, 1], strides = [1, 1]} : vector<16x4xi32> to vector<16x1xi32>
    %20 = vector.broadcast %19 : vector<16x1xi32> to vector<16x16xi32>
    %21 = vector.broadcast %1 : vector<1x16xi32> to vector<16x16xi32>
    %22 = arith.cmpi eq, %20, %21 : vector<16x16xi32>
    %23 = arith.extui %22 : vector<16x16xi1> to vector<16x16xi32>
    %24 = arith.addi %18, %23 : vector<16x16xi32>
    %25 = arith.sitofp %24 : vector<16x16xi32> to vector<16x16xbf16>
    %c0_1 = arith.constant 0 : index
    %c0_2 = arith.constant 0 : index
    %26 = vector.load %arg2[%c0_1, %c0_2] : memref<16x512xbf16, #tpu.memory_space<vmem>>, vector<16x512xbf16>
    %cst = arith.constant dense<0.000000e+00> : vector<16x512xf32>
    %27 = tpu.matmul %25, %26, %cst {dimension_numbers = #tpu.dot_dimension_numbers<[1], [0], [0], [1], [0, 0, 1, 1], [], []>} : vector<16x16xbf16>, vector<16x512xbf16>, vector<16x512xf32> -> vector<16x512xf32>
    %c0_3 = arith.constant 0 : index
    %c0_4 = arith.constant 0 : index
    %28 = vector.load %arg3[%c0_3, %c0_4] : memref<1x512xf32, #tpu.memory_space<vmem>>, vector<1x512xf32>
    %29 = vector.broadcast %28 : vector<1x512xf32> to vector<16x512xf32>
    %30 = arith.mulf %27, %29 : vector<16x512xf32>
    %c0_5 = arith.constant 0 : index
    %c0_6 = arith.constant 0 : index
    %31 = vector.load %arg4[%c0_5, %c0_6] : memref<16x512xf32, #tpu.memory_space<vmem>>, vector<16x512xf32>
    tpu.vector_store %arg4[%c0_5, %c0_6], %30 {strides = array<i32>} : memref<16x512xf32, #tpu.memory_space<vmem>>, vector<16x512xf32>,
    return
  }
  func.func @transform_0(%arg0: i32) -> (i32, i32) {
    %c0_i32 = arith.constant 0 : i32
    %c0_i32_0 = arith.constant 0 : i32
    return %arg0, %c0_i32 : i32, i32
  }
  func.func @transform_1(%arg0: i32) -> (i32, i32) {
    %c0_i32 = arith.constant 0 : i32
    %c0_i32_0 = arith.constant 0 : i32
    %c0_i32_1 = arith.constant 0 : i32
    return %c0_i32, %c0_i32_0 : i32, i32
  }
  func.func @transform_2(%arg0: i32) -> (i32, i32) {
    %c0_i32 = arith.constant 0 : i32
    %c0_i32_0 = arith.constant 0 : i32
    %c0_i32_1 = arith.constant 0 : i32
    return %c0_i32, %c0_i32_0 : i32, i32
  }
  func.func @transform_3(%arg0: i32) -> (i32, i32) {
    %c0_i32 = arith.constant 0 : i32
    %c0_i32_0 = arith.constant 0 : i32
    return %arg0, %c0_i32 : i32, i32
  }
}

</mosaic_0001>

<llo_original>
// kernel: tpu_custom_call.1
$region0: #{tpu_custom_call.1}
  #allocation0 [shape = 'u32[]', space=smem, size = 0x4, offset = 0x4, fixed_abs, tag = 'smem constant byte address 0x4 - core index']
  #allocation1 [shape = 'u32[72,128]{1,0:T(1,128)}', space=vmem, size = 0x9000, scoped, tag = 'internal scratch']
  %s0 = inlined_call_operand.vmem [shape: s32[16,4], index: 0, kind: input, shape index: {}]
  %s1 = inlined_call_operand.hbm [shape: bf16[16,512], index: 1, kind: input, shape index: {}]
  %s2 = inlined_call_operand.vmem [shape: f32[1,512], index: 2, kind: input, shape index: {}]
  %s3 = inlined_call_operand.hbm [shape: f32[16,512], index: 3, kind: output, shape index: {}]
  %s4 = sld [smem:[#allocation0]]
  $region26: #{tpu_custom_call.1} parent=0
    _
  %s6 = ssub.s32 1, %s4
  %s7 = scalar_select 0, %s6, %s4
  $region1: #{tpu_custom_call.1} parent=0
    #allocation2 [shape = 'u8[16384]{0}', space=vmem, size = 0x4000, scoped, tag = 'input window, operand 1, single buffered']
    #allocation3 [shape = 's32[1]{0}', space=sflag, size = 0x4, scoped, tag = 'scoped memory for tpu_custom_call.1']
    #allocation4 [shape = 's32[1]{0}', space=sflag, size = 0x4, scoped, tag = 'scoped memory for tpu_custom_call.1']
    #allocation5 [shape = 'u8[32768]{0}', space=vmem, size = 0x8000, scoped, tag = 'output window, operand 0, single buffered']
    %8 = vsyncpa [#allocation3], 0
    %9 = vsyncpa [#allocation4], 0
    // Predicated region
    $region2: #{tpu_custom_call.1} parent=1 // pred_check
      _
    $region3: #{tpu_custom_call.1} parent=1 // pred_check_branch
      %11 = sbr.rel (0) target = $region5
    $region4: #{tpu_custom_call.1} parent=1 // pred_region
      _
    $region5: #{tpu_custom_call.1} parent=1 // pred_fallthru
      _
    // Predicated region
    $region6: #{tpu_custom_call.1} parent=1 // pred_check
      _
    $region7: #{tpu_custom_call.1} parent=1 // pred_check_branch
      %13 = sbr.rel (0) target = $region9
    $region8: #{tpu_custom_call.1} parent=1 // pred_region
      %15 = vsyncadd [#allocation3], 0
      %s16 = sshll.u32 %s1, 4
      %s17 = int_to_ptr.hbm [resolvable:$true] %s16
      %s18 = sshll.u32 [#allocation2], 4
      %s19 = int_to_ptr.vmem [resolvable:$true] %s18
      %24 = dma.hbm_to_vmem [thread:$0]  %s17, 512, %s19, [#allocation3], 256, 256, 16
    $region9: #{tpu_custom_call.1} parent=1 // pred_fallthru
      _
    // Predicated region
    $region10: #{tpu_custom_call.1} parent=1 // pred_check
      _
    $region11: #{tpu_custom_call.1} parent=1 // pred_check_branch
      %26 = sbr.rel (0) target = $region13
    $region12: #{tpu_custom_call.1} parent=1 // pred_region
      _
    $region13: #{tpu_custom_call.1} parent=1 // pred_fallthru
      _
    // Predicated region
    $region14: #{tpu_custom_call.1} parent=1 // pred_check
      _
    $region15: #{tpu_custom_call.1} parent=1 // pred_check_branch
      %28 = sbr.rel (0) target = $region17
    $region16: #{tpu_custom_call.1} parent=1 // pred_region
      %30 = dma.done [#allocation3], 512
    $region17: #{tpu_custom_call.1} parent=1 // pred_fallthru
      _
    %v32 = vld [vmem:[%s0] sm:$0xff]
    %v33 = vld [vmem:[%s0 + $0x8] sm:$0xff]
    %v34 = vlaneseq
    %v35 = vand.u32 %v34, 127
    %36 = vset.pattern.permute.xlu0 0
    %37 = vperm.xlu0 %36, %v32
    %v38 = vpop.permute.xlu0 %37
    %39 = vset.pattern.permute.xlu0 0
    %40 = vperm.xlu0 %39, %v33
    %v41 = vpop.permute.xlu0 %40
    %vm42 = vcmp.eq.s32.totalorder %v38, %v35
    %vm43 = vcmp.eq.s32.totalorder %v41, %v35
    %v44 = vsel %vm42, 1, 0
    %v45 = vsel %vm43, 1, 0
    %46 = vset.pattern.permute.xlu0 1
    %47 = vperm.xlu0 %46, %v32
    %v48 = vpop.permute.xlu0 %47
    %49 = vset.pattern.permute.xlu0 1
    %50 = vperm.xlu0 %49, %v33
    %v51 = vpop.permute.xlu0 %50
    %vm52 = vcmp.eq.s32.totalorder %v48, %v35
    %vm53 = vcmp.eq.s32.totalorder %v51, %v35
    %v54 = vsel %vm52, 1, 0
    %v55 = vsel %vm53, 1, 0
    %v56 = vadd.s32 %v44, %v54
    %v57 = vadd.s32 %v45, %v55
    %58 = vset.pattern.permute.xlu0 2
    %59 = vperm.xlu0 %58, %v32
    %v60 = vpop.permute.xlu0 %59
    %61 = vset.pattern.permute.xlu0 2
    %62 = vperm.xlu0 %61, %v33
    %v63 = vpop.permute.xlu0 %62
    %vm64 = vcmp.eq.s32.totalorder %v60, %v35
    %vm65 = vcmp.eq.s32.totalorder %v63, %v35
    %v66 = vsel %vm64, 1, 0
    %v67 = vsel %vm65, 1, 0
    %v68 = vadd.s32 %v56, %v66
    %v69 = vadd.s32 %v57, %v67
    %70 = vset.pattern.permute.xlu0 3
    %71 = vperm.xlu0 %70, %v32
    %v72 = vpop.permute.xlu0 %71
    %73 = vset.pattern.permute.xlu0 3
    %74 = vperm.xlu0 %73, %v33
    %v75 = vpop.permute.xlu0 %74
    %vm76 = vcmp.eq.s32.totalorder %v72, %v35
    %vm77 = vcmp.eq.s32.totalorder %v75, %v35
    %v78 = vsel %vm76, 1, 0
    %v79 = vsel %vm77, 1, 0
    %v80 = vadd.s32 %v68, %v78
    %v81 = vadd.s32 %v69, %v79
    %v82 = vcvt.s32.f32 %v80
    %v83 = vcvt.s32.f32 %v81
    %v84 = vpack.c.bf16 %v83, %v82
    %v85 = vld [vmem:[#allocation2] sm:$0xff]
    %v86 = vld [vmem:[#allocation2 + $0x8] sm:$0xff]
    %v87 = vld [vmem:[#allocation2 + $0x10] sm:$0xff]
    %v88 = vld [vmem:[#allocation2 + $0x18] sm:$0xff]
    %v93 = vunpack.c.l.b16 %v85
    %v94 = vunpack.c.h.b16 %v85
    %v95 = vunpack.c.l.b16 %v86
    %v96 = vunpack.c.h.b16 %v86
    %v97 = vunpack.c.l.b16 %v87
    %v98 = vunpack.c.h.b16 %v87
    %v99 = vunpack.c.l.b16 %v88
    %v100 = vunpack.c.h.b16 %v88
    %v101 = vpack.c.b16 %v97, %v93
    %v102 = vpack.c.b16 %v98, %v94
    %v103 = vpack.c.b16 %v99, %v95
    %v104 = vpack.c.b16 %v100, %v96
    %vm109 = vcmask 130048
    %v111 = vsel %vm109, %v84, 0
    %113 = vmatpush.bf16.msra.mxu0 0
    %114 = vmatpush.bf16.msra.mxu0 0
    %115 = vmatpush.bf16.msra.mxu0 0
    %116 = vmatpush.bf16.msra.mxu0 0
    %117 = vmatpush.bf16.msra.mxu0 0
    %118 = vmatpush.bf16.msra.mxu0 0
    %119 = vmatpush.bf16.msra.mxu0 0
    %120 = vmatpush.bf16.msra.mxu0 %v101
    %121 = vmatmul.bf16.gmra.mxu0 %v111
    %v122 = vpop.f32.mrf.mxu0
    %v123 = vadd.f32 0.0, %v122
    %v124 = vpop.f32.mrf.mxu0
    %v125 = vadd.f32 0.0, %v124
    %126 = vdwg.mxu0
    %127 = vmatpush.bf16.msra.mxu0 0
    %128 = vmatpush.bf16.msra.mxu0 0
    %129 = vmatpush.bf16.msra.mxu0 0
    %130 = vmatpush.bf16.msra.mxu0 0
    %131 = vmatpush.bf16.msra.mxu0 0
    %132 = vmatpush.bf16.msra.mxu0 0
    %133 = vmatpush.bf16.msra.mxu0 0
    %134 = vmatpush.bf16.msra.mxu0 %v102
    %135 = vmatmul.bf16.gmra.mxu0 %v111
    %v136 = vpop.f32.mrf.mxu0
    %v137 = vadd.f32 0.0, %v136
    %v138 = vpop.f32.mrf.mxu0
    %v139 = vadd.f32 0.0, %v138
    %140 = vdwg.mxu0
    %141 = vmatpush.bf16.msra.mxu0 0
    %142 = vmatpush.bf16.msra.mxu0 0
    %143 = vmatpush.bf16.msra.mxu0 0
    %144 = vmatpush.bf16.msra.mxu0 0
    %145 = vmatpush.bf16.msra.mxu0 0
    %146 = vmatpush.bf16.msra.mxu0 0
    %147 = vmatpush.bf16.msra.mxu0 0
    %148 = vmatpush.bf16.msra.mxu0 %v103
    %149 = vmatmul.bf16.gmra.mxu0 %v111
    %v150 = vpop.f32.mrf.mxu0
    %v151 = vadd.f32 0.0, %v150
    %v152 = vpop.f32.mrf.mxu0
    %v153 = vadd.f32 0.0, %v152
    %154 = vdwg.mxu0
    %155 = vmatpush.bf16.msra.mxu0 0
    %156 = vmatpush.bf16.msra.mxu0 0
    %157 = vmatpush.bf16.msra.mxu0 0
    %158 = vmatpush.bf16.msra.mxu0 0
    %159 = vmatpush.bf16.msra.mxu0 0
    %160 = vmatpush.bf16.msra.mxu0 0
    %161 = vmatpush.bf16.msra.mxu0 0
    %162 = vmatpush.bf16.msra.mxu0 %v104
    %163 = vmatmul.bf16.gmra.mxu0 %v111
    %v164 = vpop.f32.mrf.mxu0
    %v165 = vadd.f32 0.0, %v164
    %v166 = vpop.f32.mrf.mxu0
    %v167 = vadd.f32 0.0, %v166
    %168 = vdwg.mxu0
    %v169 = vld [vmem:[%s2] sm:$0xf]
    %v171 = vperm.slane %v169, 0
    %v172 = vperm.slane %v169, 1
    %v173 = vperm.slane %v169, 2
    %v174 = vperm.slane %v169, 3
    %v179 = vmul.f32 %v123, %v171
    %v180 = vmul.f32 %v137, %v172
    %v181 = vmul.f32 %v151, %v173
    %v182 = vmul.f32 %v165, %v174
    %v183 = vmul.f32 %v125, %v171
    %v184 = vmul.f32 %v139, %v172
    %v185 = vmul.f32 %v153, %v173
    %v186 = vmul.f32 %v167, %v174
    %187 = vst [vmem:[#allocation5] sm:$0xff] %v179
    %188 = vst [vmem:[#allocation5 + $0x8] sm:$0xff] %v180
    %189 = vst [vmem:[#allocation5 + $0x10] sm:$0xff] %v181
    %190 = vst [vmem:[#allocation5 + $0x18] sm:$0xff] %v182
    %191 = vst [vmem:[#allocation5 + $0x20] sm:$0xff] %v183
    %192 = vst [vmem:[#allocation5 + $0x28] sm:$0xff] %v184
    %193 = vst [vmem:[#allocation5 + $0x30] sm:$0xff] %v185
    %194 = vst [vmem:[#allocation5 + $0x38] sm:$0xff] %v186
    // Predicated region
    $region18: #{tpu_custom_call.1} parent=1 // pred_check
      _
    $region19: #{tpu_custom_call.1} parent=1 // pred_check_branch
      %196 = sbr.rel (0) target = $region21
    $region20: #{tpu_custom_call.1} parent=1 // pred_region
      %198 = vsyncadd [#allocation4], 0
      %s199 = sshll.u32 [#allocation5], 4
      %s200 = int_to_ptr.vmem [resolvable:$true] %s199
      %s201 = sshll.u32 %s3, 4
      %s202 = int_to_ptr.hbm [resolvable:$true] %s201
      %207 = dma.vmem_to_hbm [thread:$0]  %s200, 1024, %s202, [#allocation4], 512, 512, 32
    $region21: #{tpu_custom_call.1} parent=1 // pred_fallthru
      _
    // Predicated region
    $region22: #{tpu_custom_call.1} parent=1 // pred_check
      _
    $region23: #{tpu_custom_call.1} parent=1 // pred_check_branch
      %209 = sbr.rel (0) target = $region25
    $region24: #{tpu_custom_call.1} parent=1 // pred_region
      %211 = dma.done [#allocation4], 1024
    $region25: #{tpu_custom_call.1} parent=1 // pred_fallthru
      _
    %212 = vsyncpa [#allocation3], 1
    %213 = vsyncpa [#allocation4], 1

</llo_original>
